<compile_context>
chip_gen: v5e
topology: v5e:2x2
jax: 0.10.0
libtpu: 0.0.40
codegen_flags: <defaults>
</compile_context>

<pallas_src>
import functools
import math

import jax
import jax.numpy as jnp
from jax.experimental import pallas as pl
from jax.experimental.pallas import tpu as pltpu

_LANE = 128
_THR1 = float(math.log1p(5.0))
_THR2 = float(math.log1p(25.0))
_THR3 = float(math.log1p(50.0))


def _mae_loss_kernel(y_pred_ref, y_true_ref, num_ref, den_ref,
                     acc_num_ref, acc_den_ref, *, total, needs_mask):
    c = pl.program_id(0)          # TensorCore split (parallel axis)
    i = pl.program_id(1)          # reduction axis over row-blocks
    inner = pl.num_programs(1)

    @pl.when(i == 0)
    def _():
        acc_num_ref[...] = jnp.zeros_like(acc_num_ref)
        acc_den_ref[...] = jnp.zeros_like(acc_den_ref)

    y_true = y_true_ref[...]
    y_pred = y_pred_ref[...]
    tile_rows, lanes = y_true.shape

    # fixed_weights = {1: 1.0, 2: 10.0, 3: 50.0, 4: 100.0}
    w = jnp.where(
        y_true < _THR1,
        jnp.float32(1.0),
        jnp.where(
            y_true < _THR2,
            jnp.float32(10.0),
            jnp.where(y_true < _THR3, jnp.float32(50.0), jnp.float32(100.0)),
        ),
    )
    diff = jnp.abs(y_true - y_pred)

    if needs_mask:
        # Mask padded elements / out-of-range (clamped, duplicated) blocks
        # using the *intended* global linear element index.
        block_elems = tile_rows * lanes
        offset = (c * inner + i) * block_elems
        row = jax.lax.broadcasted_iota(jnp.int32, (tile_rows, lanes), 0)
        lane = jax.lax.broadcasted_iota(jnp.int32, (tile_rows, lanes), 1)
        idx = offset + row * lanes + lane
        valid = idx < total
        w = jnp.where(valid, w, jnp.float32(0.0))
        diff = jnp.where(valid, diff, jnp.float32(0.0))  # also kills NaN/Inf garbage

    contrib = w * diff
    # Vector accumulation: (tile_rows,128) -> sum over 8-row groups -> (8,128).
    acc_num_ref[...] += contrib.reshape(tile_rows // 8, 8, lanes).sum(axis=0)
    acc_den_ref[...] += w.reshape(tile_rows // 8, 8, lanes).sum(axis=0)

    @pl.when(i == inner - 1)
    def _():
        num_ref[0, 0] = jnp.sum(acc_num_ref[...])
        den_ref[0, 0] = jnp.sum(acc_den_ref[...])


@functools.partial(jax.jit, static_argnames=("tile_rows",))
def mae_loss(y_pred, y_true, *, tile_rows=1024):
    assert y_pred.shape == y_true.shape
    total = int(y_pred.size)

    # Pad (at most 8*128-1 elements) so the slab is (rows_padded, 128) with
    # rows_padded a multiple of 8.  Never pad to the full tile size.
    rows = -(-total // _LANE)
    rows_padded = ((rows + 7) // 8) * 8
    pad = rows_padded * _LANE - total

    tile_rows = max(8, (int(tile_rows) // 8) * 8)
    tile_rows_eff = min(tile_rows, rows_padded)
    blocks_total = -(-rows_padded // tile_rows_eff)

    num_splits = 2 if blocks_total >= 2 else 1          # v7x: 2 TensorCores
    inner_steps = -(-blocks_total // num_splits)
    exact_blocks = (num_splits * inner_steps == blocks_total)
    needs_mask = (pad != 0) or (not exact_blocks) or (rows_padded % tile_rows_eff != 0)

    yp = y_pred.reshape(-1).astype(jnp.float32)
    yt = y_true.reshape(-1).astype(jnp.float32)
    if pad:
        yp = jnp.pad(yp, (0, pad))
        yt = jnp.pad(yt, (0, pad))
    yp = yp.reshape(rows_padded, _LANE)
    yt = yt.reshape(rows_padded, _LANE)

    if exact_blocks:
        in_map = lambda c, i: (c * inner_steps + i, 0)
    else:
        # Clamp so the window always stays in-bounds; the duplicated block is
        # fully masked in-kernel via its (unclamped) global element index.
        in_map = lambda c, i: (jnp.minimum(c * inner_steps + i, blocks_total - 1), 0)

    in_spec = pl.BlockSpec((tile_rows_eff, _LANE), in_map)
    out_spec = pl.BlockSpec((1, 1), lambda c, i: (c, 0), memory_space=pltpu.SMEM)

    kernel = functools.partial(_mae_loss_kernel, total=total, needs_mask=needs_mask)

    num, den = pl.pallas_call(
        kernel,
        out_shape=(
            jax.ShapeDtypeStruct((num_splits, 1), jnp.float32),
            jax.ShapeDtypeStruct((num_splits, 1), jnp.float32),
        ),
        grid_spec=pltpu.PrefetchScalarGridSpec(
            num_scalar_prefetch=0,
            grid=(num_splits, inner_steps),
            in_specs=[in_spec, in_spec],
            out_specs=[out_spec, out_spec],
            scratch_shapes=[
                pltpu.VMEM((8, _LANE), jnp.float32),
                pltpu.VMEM((8, _LANE), jnp.float32),
            ],
        ),
        compiler_params=pltpu.CompilerParams(
            dimension_semantics=("parallel", "arbitrary"),
        ),
    )(yp, yt)

    return jnp.sum(num) / jnp.sum(den)


def _mae_loss_ref(y_pred, y_true):
    """Pure-JAX reference mirroring the PyTorch module."""
    y = y_true.astype(jnp.float32)
    w = jnp.where(
        y < _THR1, 1.0, jnp.where(y < _THR2, 10.0, jnp.where(y < _THR3, 50.0, 100.0))
    ).astype(jnp.float32)
    return jnp.sum(w * jnp.abs(y - y_pred.astype(jnp.float32))) / jnp.sum(w)


if __name__ == "__main__":
    key = jax.random.PRNGKey(0)
    k1, k2 = jax.random.split(key)

    # STConvS2S target layout: (batch, channels=1, seq, lat, lon)
    shape = (2, 1, 4, 16, 16)
    # Span all four weight classes: log1p-scale rainfall in [0, log1p(80)).
    y_true = jax.random.uniform(k1, shape, jnp.float32) * jnp.log1p(80.0)
    y_pred = y_true + 0.1 * jax.random.normal(k2, shape, jnp.float32)

    out = jax.block_until_ready(mae_loss(y_pred, y_true))
    ref = _mae_loss_ref(y_pred, y_true)
    assert jnp.allclose(out, ref, rtol=1e-5, atol=1e-5), (out, ref)

    # Exercise the multi-block + 2-way TensorCore-split path with a tiny tile.
    out2 = jax.block_until_ready(mae_loss(y_pred, y_true, tile_rows=8))
    assert jnp.allclose(out2, ref, rtol=1e-5, atol=1e-5), (out2, ref)

    # Exercise the padded / partial-block / clamped-index in-kernel masking path.
    shape3 = (2, 1, 5, 15, 17)
    k3, k4 = jax.random.split(k2)
    y_true3 = jax.random.uniform(k3, shape3, jnp.float32) * jnp.log1p(80.0)
    y_pred3 = y_true3 + 0.1 * jax.random.normal(k4, shape3, jnp.float32)
    out3 = jax.block_until_ready(mae_loss(y_pred3, y_true3, tile_rows=8))
    ref3 = _mae_loss_ref(y_pred3, y_true3)
    assert jnp.allclose(out3, ref3, rtol=1e-5, atol=1e-5), (out3, ref3)

    print("KERNEL_OK")
</pallas_src>

<mosaic_0001>
module attributes {stable_mosaic.version = 11 : i64} {
  func.func @_mae_loss_kernel(%arg0: i32, %arg1: i32, %arg2: memref<16x128xf32, #tpu.memory_space<vmem>>, %arg3: memref<16x128xf32, #tpu.memory_space<vmem>>, %arg4: memref<1x1xf32, #tpu.memory_space<smem>>, %arg5: memref<1x1xf32, #tpu.memory_space<smem>>, %arg6: memref<8x128xf32, #tpu.memory_space<vmem>>, %arg7: memref<8x128xf32, #tpu.memory_space<vmem>>) attributes {dimension_semantics = [#tpu.dimension_semantics<parallel>, #tpu.dimension_semantics<arbitrary>], iteration_bounds = array<i64: 1, 1>, scalar_prefetch = 0 : i64, scratch_operands = 2 : i64, tpu.core_type = #tpu.core_type<tc>, window_params = [{transform_indices = @transform_0, window_bounds = array<i64: 16, 128>}, {transform_indices = @transform_1, window_bounds = array<i64: 16, 128>}, {transform_indices = @transform_2, window_bounds = array<i64: 1, 1>}, {transform_indices = @transform_3, window_bounds = array<i64: 1, 1>}]} {
    %c0_i32 = arith.constant 0 : i32
    %0 = arith.cmpi eq, %arg1, %c0_i32 : i32
    %1 = arith.extui %0 : i1 to i32
    %c0_i32_0 = arith.constant 0 : i32
    %2 = arith.cmpi ne, %1, %c0_i32_0 : i32
    scf.if %2 {
      %cst_22 = arith.constant 0.000000e+00 : f32
      %34 = vector.broadcast %cst_22 : f32 to vector<8x128xf32>
      %c0_23 = arith.constant 0 : index
      %c0_24 = arith.constant 0 : index
      %35 = vector.load %arg6[%c0_23, %c0_24] : memref<8x128xf32, #tpu.memory_space<vmem>>, vector<8x128xf32>
      tpu.vector_store %arg6[%c0_23, %c0_24], %34 {strides = array<i32>} : memref<8x128xf32, #tpu.memory_space<vmem>>, vector<8x128xf32>,
      %cst_25 = arith.constant 0.000000e+00 : f32
      %36 = vector.broadcast %cst_25 : f32 to vector<8x128xf32>
      %c0_26 = arith.constant 0 : index
      %c0_27 = arith.constant 0 : index
      %37 = vector.load %arg7[%c0_26, %c0_27] : memref<8x128xf32, #tpu.memory_space<vmem>>, vector<8x128xf32>
      tpu.vector_store %arg7[%c0_26, %c0_27], %36 {strides = array<i32>} : memref<8x128xf32, #tpu.memory_space<vmem>>, vector<8x128xf32>,
    } else {
    }
    %c0 = arith.constant 0 : index
    %c0_1 = arith.constant 0 : index
    %3 = vector.load %arg3[%c0, %c0_1] : memref<16x128xf32, #tpu.memory_space<vmem>>, vector<16x128xf32>
    %c0_2 = arith.constant 0 : index
    %c0_3 = arith.constant 0 : index
    %4 = vector.load %arg2[%c0_2, %c0_3] : memref<16x128xf32, #tpu.memory_space<vmem>>, vector<16x128xf32>
    %cst = arith.constant 1.79175949 : f32
    %5 = vector.broadcast %cst : f32 to vector<16x128xf32>
    %6 = arith.cmpf olt, %3, %5 : vector<16x128xf32>
    %cst_4 = arith.constant 3.25809646 : f32
    %7 = vector.broadcast %cst_4 : f32 to vector<16x128xf32>
    %8 = arith.cmpf olt, %3, %7 : vector<16x128xf32>
    %cst_5 = arith.constant 3.93182564 : f32
    %9 = vector.broadcast %cst_5 : f32 to vector<16x128xf32>
    %10 = arith.cmpf olt, %3, %9 : vector<16x128xf32>
    %cst_6 = arith.constant 5.000000e+01 : f32
    %cst_7 = arith.constant 1.000000e+02 : f32
    %11 = vector.broadcast %cst_6 : f32 to vector<16x128xf32>
    %12 = vector.broadcast %cst_7 : f32 to vector<16x128xf32>
    %13 = arith.select %10, %11, %12 : vector<16x128xi1>, vector<16x128xf32>
    %cst_8 = arith.constant 1.000000e+01 : f32
    %14 = vector.broadcast %cst_8 : f32 to vector<16x128xf32>
    %15 = arith.select %8, %14, %13 : vector<16x128xi1>, vector<16x128xf32>
    %cst_9 = arith.constant 1.000000e+00 : f32
    %16 = vector.broadcast %cst_9 : f32 to vector<16x128xf32>
    %17 = arith.select %6, %16, %15 : vector<16x128xi1>, vector<16x128xf32>
    %18 = arith.subf %3, %4 : vector<16x128xf32>
    %19 = math.absf %18 : vector<16x128xf32>
    %20 = arith.mulf %17, %19 : vector<16x128xf32>
    %c0_10 = arith.constant 0 : index
    %c0_11 = arith.constant 0 : index
    %21 = vector.load %arg6[%c0_10, %c0_11] : memref<8x128xf32, #tpu.memory_space<vmem>>, vector<8x128xf32>
    %22 = vector.shape_cast %20 : vector<16x128xf32> to vector<2x8x128xf32>
    %cst_12 = arith.constant dense<0.000000e+00> : vector<8x128xf32>
    %23 = vector.multi_reduction <add>, %22, %cst_12 [0] : vector<2x8x128xf32> to vector<8x128xf32>
    %24 = arith.addf %21, %23 : vector<8x128xf32>
    %c0_13 = arith.constant 0 : index
    %c0_14 = arith.constant 0 : index
    %25 = vector.load %arg6[%c0_13, %c0_14] : memref<8x128xf32, #tpu.memory_space<vmem>>, vector<8x128xf32>
    tpu.vector_store %arg6[%c0_13, %c0_14], %24 {strides = array<i32>} : memref<8x128xf32, #tpu.memory_space<vmem>>, vector<8x128xf32>,
    %c0_15 = arith.constant 0 : index
    %c0_16 = arith.constant 0 : index
    %26 = vector.load %arg7[%c0_15, %c0_16] : memref<8x128xf32, #tpu.memory_space<vmem>>, vector<8x128xf32>
    %27 = vector.shape_cast %17 : vector<16x128xf32> to vector<2x8x128xf32>
    %cst_17 = arith.constant dense<0.000000e+00> : vector<8x128xf32>
    %28 = vector.multi_reduction <add>, %27, %cst_17 [0] : vector<2x8x128xf32> to vector<8x128xf32>
    %29 = arith.addf %26, %28 : vector<8x128xf32>
    %c0_18 = arith.constant 0 : index
    %c0_19 = arith.constant 0 : index
    %30 = vector.load %arg7[%c0_18, %c0_19] : memref<8x128xf32, #tpu.memory_space<vmem>>, vector<8x128xf32>
    tpu.vector_store %arg7[%c0_18, %c0_19], %29 {strides = array<i32>} : memref<8x128xf32, #tpu.memory_space<vmem>>, vector<8x128xf32>,
    %c0_i32_20 = arith.constant 0 : i32
    %31 = arith.cmpi eq, %arg1, %c0_i32_20 : i32
    %32 = arith.extui %31 : i1 to i32
    %c0_i32_21 = arith.constant 0 : i32
    %33 = arith.cmpi ne, %32, %c0_i32_21 : i32
    scf.if %33 {
      %c0_22 = arith.constant 0 : index
      %c0_23 = arith.constant 0 : index
      %34 = vector.load %arg6[%c0_22, %c0_23] : memref<8x128xf32, #tpu.memory_space<vmem>>, vector<8x128xf32>
      %35 = vector.shape_cast %34 : vector<8x128xf32> to vector<1x8x128xf32>
      %cst_24 = arith.constant dense<0.000000e+00> : vector<1xf32>
      %36 = vector.multi_reduction <add>, %35, %cst_24 [1, 2] : vector<1x8x128xf32> to vector<1xf32>
      %37 = vector.shape_cast %36 : vector<1xf32> to vector<1x1x1xf32>
      %38 = vector.extract %37[0, 0, 0] : f32 from vector<1x1x1xf32>
      %c0_25 = arith.constant 0 : index
      %c0_26 = arith.constant 0 : index
      %39 = memref.load %arg4[%c0_25, %c0_26] : memref<1x1xf32, #tpu.memory_space<smem>>
      memref.store %38, %arg4[%c0_25, %c0_26] : memref<1x1xf32, #tpu.memory_space<smem>>
      %c0_27 = arith.constant 0 : index
      %c0_28 = arith.constant 0 : index
      %40 = vector.load %arg7[%c0_27, %c0_28] : memref<8x128xf32, #tpu.memory_space<vmem>>, vector<8x128xf32>
      %41 = vector.shape_cast %40 : vector<8x128xf32> to vector<1x8x128xf32>
      %cst_29 = arith.constant dense<0.000000e+00> : vector<1xf32>
      %42 = vector.multi_reduction <add>, %41, %cst_29 [1, 2] : vector<1x8x128xf32> to vector<1xf32>
      %43 = vector.shape_cast %42 : vector<1xf32> to vector<1x1x1xf32>
      %44 = vector.extract %43[0, 0, 0] : f32 from vector<1x1x1xf32>
      %c0_30 = arith.constant 0 : index
      %c0_31 = arith.constant 0 : index
      %45 = memref.load %arg5[%c0_30, %c0_31] : memref<1x1xf32, #tpu.memory_space<smem>>
      memref.store %44, %arg5[%c0_30, %c0_31] : memref<1x1xf32, #tpu.memory_space<smem>>
    } else {
    }
    return
  }
  func.func @transform_0(%arg0: i32, %arg1: i32) -> (i32, i32) {
    %c1_i32 = arith.constant 1 : i32
    %0 = arith.muli %arg0, %c1_i32 : i32
    %1 = arith.addi %0, %arg1 : i32
    %c0_i32 = arith.constant 0 : i32
    %c0_i32_0 = arith.constant 0 : i32
    return %1, %c0_i32 : i32, i32
  }
  func.func @transform_1(%arg0: i32, %arg1: i32) -> (i32, i32) {
    %c1_i32 = arith.constant 1 : i32
    %0 = arith.muli %arg0, %c1_i32 : i32
    %1 = arith.addi %0, %arg1 : i32
    %c0_i32 = arith.constant 0 : i32
    %c0_i32_0 = arith.constant 0 : i32
    return %1, %c0_i32 : i32, i32
  }
  func.func @transform_2(%arg0: i32, %arg1: i32) -> (i32, i32) {
    %c0_i32 = arith.constant 0 : i32
    %c0_i32_0 = arith.constant 0 : i32
    return %arg0, %c0_i32 : i32, i32
  }
  func.func @transform_3(%arg0: i32, %arg1: i32) -> (i32, i32) {
    %c0_i32 = arith.constant 0 : i32
    %c0_i32_0 = arith.constant 0 : i32
    return %arg0, %c0_i32 : i32, i32
  }
}

</mosaic_0001>

<llo_original>
// kernel: mae_loss.1
$region0: #{mae_loss.1}
  #allocation0 [shape = 'u32[]', space=smem, size = 0x4, offset = 0x4, fixed_abs, tag = 'smem constant byte address 0x4 - core index']
  #allocation1 [shape = 'u32[72,128]{1,0:T(1,128)}', space=vmem, size = 0x9000, scoped, tag = 'internal scratch']
  #allocation2 [shape = 'f32[8,128]{1,0:T(8,128)}', space=vmem, size = 0x1000, scoped, tag = 'scratch operand']
  #allocation3 [shape = 'f32[8,128]{1,0:T(8,128)}', space=vmem, size = 0x1000, scoped, tag = 'scratch operand']
  %s0 = inlined_call_operand.vmem [shape: f32[16,128], index: 0, kind: input, shape index: {}]
  %s1 = inlined_call_operand.vmem [shape: f32[16,128], index: 1, kind: input, shape index: {}]
  %s2 = inlined_call_operand.hbm [shape: f32[1,1], index: 2, kind: output, shape index: {0}]
  %s3 = inlined_call_operand.hbm [shape: f32[1,1], index: 3, kind: output, shape index: {1}]
  %4 = xla_tuple %s2, %s3
  %s5 = sld [smem:[#allocation0]]
  $region34: #{mae_loss.1} parent=0
    _
  %s7 = ssub.s32 1, %s5
  %s8 = scalar_select 0, %s7, %s5
  $region1: #{mae_loss.1} parent=0
    #allocation4 [shape = 'u8[512]{0}', space=smem, size = 0x200, scoped, tag = 'output window, operand 0, single buffered']
    #allocation5 [shape = 's32[1]{0}', space=sflag, size = 0x4, scoped, tag = 'scoped memory for mae_loss.1']
    #allocation6 [shape = 'u8[512]{0}', space=smem, size = 0x200, scoped, tag = 'output window, operand 1, single buffered']
    #allocation7 [shape = 's32[1]{0}', space=sflag, size = 0x4, scoped, tag = 'scoped memory for mae_loss.1']
    %9 = vsyncpa [#allocation5], 0
    %10 = vsyncpa [#allocation7], 0
    // Predicated region
    $region2: #{mae_loss.1} parent=1 // pred_check
      _
    $region3: #{mae_loss.1} parent=1 // pred_check_branch
      %12 = sbr.rel (0) target = $region5
    $region4: #{mae_loss.1} parent=1 // pred_region
      %s13 = sadd.s32 0, 0
      %s14 = smul.u32 2, %s13
      %p15 = scmp.lt.s32.totalorder %s14, 1
      %s16 = scalar_select %p15, %s14, 1
      %s17 = smul.addr %s16, 8
      %s18 = scalar_lea.vmem %s0, %s17
      %s19 = sadd.s32 0, 0
      %s20 = smul.u32 2, %s19
    $region5: #{mae_loss.1} parent=1 // pred_fallthru
      _
    // Predicated region
    $region6: #{mae_loss.1} parent=1 // pred_check
      _
    $region7: #{mae_loss.1} parent=1 // pred_check_branch
      %22 = sbr.rel (0) target = $region9
    $region8: #{mae_loss.1} parent=1 // pred_region
      %s23 = sadd.s32 0, 0
      %s24 = smul.u32 2, %s23
      %p25 = scmp.lt.s32.totalorder %s24, 1
      %s26 = scalar_select %p25, %s24, 1
      %s27 = smul.addr %s26, 8
      %s28 = scalar_lea.vmem %s1, %s27
      %s29 = sadd.s32 0, 0
      %s30 = smul.u32 2, %s29
    $region9: #{mae_loss.1} parent=1 // pred_fallthru
      _
    %s31 = sadd.s32 0, 0
    %s32 = smul.u32 2, %s31
    %p33 = scmp.lt.s32.totalorder %s32, 1
    %s34 = scalar_select %p33, %s32, 1
    %s35 = smul.addr %s34, 8
    %s36 = scalar_lea.vmem %s0, %s35
    %s37 = sadd.s32 0, 0
    %s38 = smul.u32 2, %s37
    %p39 = scmp.lt.s32.totalorder %s38, 1
    %s40 = scalar_select %p39, %s38, 1
    %s41 = smul.addr %s40, 8
    %s42 = scalar_lea.vmem %s1, %s41
    %s43 = sadd.s32 0, 0
    %s44 = smul.u32 2, %s43
    %p45 = scmp.lt.s32.totalorder %s44, 1
    %s46 = scalar_select %p45, %s44, 1
    %s47 = smul.addr %s46, 8
    %s48 = scalar_lea.vmem %s0, %s47
    %s49 = sadd.s32 0, 0
    %s50 = smul.u32 2, %s49
    %s51 = sadd.s32 0, 0
    %s52 = smul.u32 2, %s51
    %p53 = scmp.lt.s32.totalorder %s52, 1
    %s54 = scalar_select %p53, %s52, 1
    %s55 = smul.addr %s54, 8
    %s56 = scalar_lea.vmem %s1, %s55
    %s57 = sadd.s32 0, 0
    %s58 = smul.u32 2, %s57
    %p59 = scmp.eq.s32.totalorder 0, 0
    // Predicated region
    $region10: #{mae_loss.1} parent=1 // pred_check
      %p60 = pneg %p59
    $region11: #{mae_loss.1} parent=1 // pred_check_branch
      %62 = sbr.rel (%p60) target = $region13
    $region12: #{mae_loss.1} parent=1 // pred_region
      %63 = vst [vmem:[#allocation2] sm:$0xff] 0.0
      %64 = vst [vmem:[#allocation3] sm:$0xff] 0.0
    $region13: #{mae_loss.1} parent=1 // pred_fallthru
      _
    %v65 = vld [vmem:[%s56] sm:$0xff]
    %v66 = vld [vmem:[%s56 + $0x8] sm:$0xff]
    %v67 = vld [vmem:[%s48] sm:$0xff]
    %v68 = vld [vmem:[%s48 + $0x8] sm:$0xff]
    %vm69 = vcmp.lt.f32.partialorder %v65, 1.7917595
    %vm70 = vcmp.lt.f32.partialorder %v66, 1.7917595
    %vm71 = vcmp.lt.f32.partialorder %v65, 3.2580965
    %vm72 = vcmp.lt.f32.partialorder %v66, 3.2580965
    %vm73 = vcmp.lt.f32.partialorder %v65, 3.9318256
    %vm74 = vcmp.lt.f32.partialorder %v66, 3.9318256
    %v75 = vsel %vm73, 50.0, 100.0
    %v76 = vsel %vm74, 50.0, 100.0
    %v77 = vsel %vm71, 10.0, %v75
    %v78 = vsel %vm72, 10.0, %v76
    %v79 = vsel %vm69, 1.0, %v77
    %v80 = vsel %vm70, 1.0, %v78
    %v81 = vsub.f32 %v65, %v67
    %v82 = vsub.f32 %v66, %v68
    %v83 = vand.u32 2147483647, %v81
    %v84 = vand.u32 2147483647, %v82
    %v85 = vmul.f32 %v79, %v83
    %v86 = vmul.f32 %v80, %v84
    %v87 = vld [vmem:[#allocation2] sm:$0xff]
    %v88 = vadd.f32 %v85, %v86
    %v89 = vadd.f32 %v87, %v88
    %90 = vst [vmem:[#allocation2] sm:$0xff] %v89
    %v91 = vld [vmem:[#allocation3] sm:$0xff]
    %v92 = vadd.f32 %v79, %v80
    %v93 = vadd.f32 %v91, %v92
    %94 = vst [vmem:[#allocation3] sm:$0xff] %v93
    // Predicated region
    $region14: #{mae_loss.1} parent=1 // pred_check
      %p95 = pneg %p59
    $region15: #{mae_loss.1} parent=1 // pred_check_branch
      %97 = sbr.rel (%p95) target = $region17
    $region16: #{mae_loss.1} parent=1 // pred_region
      %v98 = vld [vmem:[#allocation2] sm:$0xff]
      %99 = vadd.xlane.f32.xlu0 %v98
      %v100 = vpop.xlane.xlu0 %99
      %v101 = vrot.slane %v100, 4
      %v102 = vadd.f32 %v100, %v101
      %v103 = vrot.slane %v102, 2
      %v104 = vadd.f32 %v102, %v103
      %v105 = vrot.slane %v104, 1
      %v106 = vadd.f32 %v104, %v105
      %s107 = vtos %v106
      %s108 = scalar_lea.smem [#allocation4], 0
      %109 = sst [smem:[%s108]] %s107
      %v110 = vld [vmem:[#allocation3] sm:$0xff]
      %111 = vadd.xlane.f32.xlu0 %v110
      %v112 = vpop.xlane.xlu0 %111
      %v113 = vrot.slane %v112, 4
      %v114 = vadd.f32 %v112, %v113
      %v115 = vrot.slane %v114, 2
      %v116 = vadd.f32 %v114, %v115
      %v117 = vrot.slane %v116, 1
      %v118 = vadd.f32 %v116, %v117
      %s119 = vtos %v118
      %s120 = scalar_lea.smem [#allocation6], 0
      %121 = sst [smem:[%s120]] %s119
    $region17: #{mae_loss.1} parent=1 // pred_fallthru
      _
    // Predicated region
    $region18: #{mae_loss.1} parent=1 // pred_check
      _
    $region19: #{mae_loss.1} parent=1 // pred_check_branch
      %123 = sbr.rel (0) target = $region21
    $region20: #{mae_loss.1} parent=1 // pred_region
      %125 = vsyncadd [#allocation5], 0
      %s127 = sshll.u32 %s2, 4
      %s128 = int_to_ptr.hbm [resolvable:$true] %s127
      %130 = dma.smem_to_hbm [#allocation4], 16, %s128, [#allocation5]
    $region21: #{mae_loss.1} parent=1 // pred_fallthru
      _
    // Predicated region
    $region22: #{mae_loss.1} parent=1 // pred_check
      _
    $region23: #{mae_loss.1} parent=1 // pred_check_branch
      %132 = sbr.rel (0) target = $region25
    $region24: #{mae_loss.1} parent=1 // pred_region
      %134 = vsyncadd [#allocation7], 0
      %s136 = sshll.u32 %s3, 4
      %s137 = int_to_ptr.hbm [resolvable:$true] %s136
      %139 = dma.smem_to_hbm [#allocation6], 16, %s137, [#allocation7]
    $region25: #{mae_loss.1} parent=1 // pred_fallthru
      _
    // Predicated region
    $region26: #{mae_loss.1} parent=1 // pred_check
      _
    $region27: #{mae_loss.1} parent=1 // pred_check_branch
      %141 = sbr.rel (0) target = $region29
    $region28: #{mae_loss.1} parent=1 // pred_region
      %143 = dma.done [#allocation5], 16
    $region29: #{mae_loss.1} parent=1 // pred_fallthru
      _
    // Predicated region
    $region30: #{mae_loss.1} parent=1 // pred_check
      _
    $region31: #{mae_loss.1} parent=1 // pred_check_branch
      %145 = sbr.rel (0) target = $region33
    $region32: #{mae_loss.1} parent=1 // pred_region
      %147 = dma.done [#allocation7], 16
    $region33: #{mae_loss.1} parent=1 // pred_fallthru
      _
    %148 = sfence
    %149 = vsyncpa [#allocation5], 1
    %150 = vsyncpa [#allocation7], 1

</llo_original>
